<compile_context>
chip_gen: v7x
topology: tpu7x:2x2x1
jax: 0.10.0
libtpu: 0.0.40
codegen_flags: <defaults>
</compile_context>

<pallas_src>
import functools

import jax
import jax.numpy as jnp
from jax.experimental import pallas as pl
from jax.experimental.pallas import tpu as pltpu


_TARGET_TILE_BYTES = 4 * 1024 * 1024     # ~4 MiB tiles -> 4x tile << 32 MiB
_VMEM_LIMIT = 32 * 1024 * 1024           # safe on v5e/v6e/v7x


def _pick_row_tile(n_rows, row_bytes):
    """Rows per tile: multiple of 8 and ~_TARGET_TILE_BYTES, or the full array."""
    tr = max(8, (_TARGET_TILE_BYTES // max(int(row_bytes), 1)) // 8 * 8)
    if tr >= n_rows:
        return n_rows            # single full block (full-dim block is always legal)
    return tr


# ----------------------------------------------------------------------------
# Kernels
# ----------------------------------------------------------------------------
def _row_stats_kernel(x_ref, sum_ref, sq_ref):
    """Per-row sum and sum-of-squares (single sweep, reduction over lanes)."""
    x = x_ref[...].astype(jnp.float32)
    sum_ref[...] = jnp.sum(x, axis=1, keepdims=True)
    sq_ref[...] = jnp.sum(x * x, axis=1, keepdims=True)


def _col_stats_kernel(x_ref, sum_ref, sq_ref, acc_sum, acc_sq, *,
                      tile_rows, n_valid_rows, mask_rows):
    """Per-column sum/sumsq accumulated across the (arbitrary) grid axis."""
    i = pl.program_id(0)

    @pl.when(i == 0)
    def _():
        acc_sum[...] = jnp.zeros_like(acc_sum)
        acc_sq[...] = jnp.zeros_like(acc_sq)

    x = x_ref[...].astype(jnp.float32)
    if mask_rows:  # only emitted when n_rows % tile_rows != 0
        row = jax.lax.broadcasted_iota(jnp.int32, x.shape, 0) + i * tile_rows
        x = jnp.where(row < n_valid_rows, x, 0.0)
    acc_sum[...] += jnp.sum(x, axis=0, keepdims=True)
    acc_sq[...] += jnp.sum(x * x, axis=0, keepdims=True)

    @pl.when(i == pl.num_programs(0) - 1)
    def _():
        sum_ref[...] = acc_sum[...]
        sq_ref[...] = acc_sq[...]


def _affine_kernel(x_ref, scale_ref, bias_ref, y_ref):
    """y = x * scale + bias (scale/bias broadcast per-row or per-column)."""
    x = x_ref[...].astype(jnp.float32)
    y_ref[...] = (x * scale_ref[...] + bias_ref[...]).astype(y_ref.dtype)


# ----------------------------------------------------------------------------
# pallas_call wrappers
# ----------------------------------------------------------------------------
def _row_stats(x2d):
    n_rows, n_cols = x2d.shape
    tr = _pick_row_tile(n_rows, n_cols * x2d.dtype.itemsize)
    grid = (pl.cdiv(n_rows, tr),)
    return pl.pallas_call(
        _row_stats_kernel,
        out_shape=(jax.ShapeDtypeStruct((n_rows, 1), jnp.float32),
                   jax.ShapeDtypeStruct((n_rows, 1), jnp.float32)),
        grid=grid,
        in_specs=[pl.BlockSpec((tr, n_cols), lambda t: (t, 0))],
        out_specs=(pl.BlockSpec((tr, 1), lambda t: (t, 0)),
                   pl.BlockSpec((tr, 1), lambda t: (t, 0))),
        compiler_params=pltpu.CompilerParams(
            dimension_semantics=("parallel",),
            vmem_limit_bytes=_VMEM_LIMIT),
    )(x2d)


def _col_stats(x2d):
    n_rows, n_cols = x2d.shape
    tr = _pick_row_tile(n_rows, n_cols * x2d.dtype.itemsize)
    grid = (pl.cdiv(n_rows, tr),)
    kernel = functools.partial(_col_stats_kernel, tile_rows=tr,
                               n_valid_rows=n_rows,
                               mask_rows=(n_rows % tr != 0))
    return pl.pallas_call(
        kernel,
        out_shape=(jax.ShapeDtypeStruct((1, n_cols), jnp.float32),
                   jax.ShapeDtypeStruct((1, n_cols), jnp.float32)),
        grid=grid,
        in_specs=[pl.BlockSpec((tr, n_cols), lambda t: (t, 0))],
        out_specs=(pl.BlockSpec((1, n_cols), lambda t: (0, 0)),
                   pl.BlockSpec((1, n_cols), lambda t: (0, 0))),
        scratch_shapes=[pltpu.VMEM((1, n_cols), jnp.float32),
                        pltpu.VMEM((1, n_cols), jnp.float32)],
        compiler_params=pltpu.CompilerParams(
            dimension_semantics=("arbitrary",),
            vmem_limit_bytes=_VMEM_LIMIT),
    )(x2d)


def _affine_rows(x2d, scale_rows, bias_rows):
    """y[r, :] = x[r, :] * scale_rows[r] + bias_rows[r], tiled over rows."""
    n_rows, n_cols = x2d.shape
    tr = _pick_row_tile(n_rows, n_cols * x2d.dtype.itemsize)
    grid = (pl.cdiv(n_rows, tr),)
    return pl.pallas_call(
        _affine_kernel,
        out_shape=jax.ShapeDtypeStruct((n_rows, n_cols), x2d.dtype),
        grid=grid,
        in_specs=[pl.BlockSpec((tr, n_cols), lambda t: (t, 0)),
                  pl.BlockSpec((tr, 1), lambda t: (t, 0)),
                  pl.BlockSpec((tr, 1), lambda t: (t, 0))],
        out_specs=pl.BlockSpec((tr, n_cols), lambda t: (t, 0)),
        compiler_params=pltpu.CompilerParams(
            dimension_semantics=("parallel",),
            vmem_limit_bytes=_VMEM_LIMIT),
    )(x2d, scale_rows, bias_rows)


def _affine_cols(x2d, scale_cols, bias_cols):
    """y[:, c] = x[:, c] * scale_cols[c] + bias_cols[c], tiled over rows."""
    n_rows, n_cols = x2d.shape
    tr = _pick_row_tile(n_rows, n_cols * x2d.dtype.itemsize)
    grid = (pl.cdiv(n_rows, tr),)
    return pl.pallas_call(
        _affine_kernel,
        out_shape=jax.ShapeDtypeStruct((n_rows, n_cols), x2d.dtype),
        grid=grid,
        in_specs=[pl.BlockSpec((tr, n_cols), lambda t: (t, 0)),
                  pl.BlockSpec((1, n_cols), lambda t: (0, 0)),
                  pl.BlockSpec((1, n_cols), lambda t: (0, 0))],
        out_specs=pl.BlockSpec((tr, n_cols), lambda t: (t, 0)),
        compiler_params=pltpu.CompilerParams(
            dimension_semantics=("parallel",),
            vmem_limit_bytes=_VMEM_LIMIT),
    )(x2d, scale_cols, bias_cols)


# ----------------------------------------------------------------------------
# Forward pass
# ----------------------------------------------------------------------------
def batch_norm_forward(x, gamma, beta, moving_mean, moving_var,
                       eps=1e-5, momentum=0.9, training=True):
    """BatchNorm forward matching the PyTorch reference.

    x: (N, C) or (N, C, H, W) in the PyTorch NCHW convention.
    Returns (Y, new_moving_mean, new_moving_var).
    """
    assert x.ndim in (2, 4)

    if x.ndim == 2:
        N, C = x.shape
        g = gamma.reshape(1, C).astype(jnp.float32)
        b = beta.reshape(1, C).astype(jnp.float32)
        mm = moving_mean.reshape(1, C).astype(jnp.float32)
        mv = moving_var.reshape(1, C).astype(jnp.float32)

        if training:
            s, sq = _col_stats(x)                       # (1, C) each
            count = jnp.float32(N)
            mean = s / count
            var = jnp.maximum(sq / count - mean * mean, 0.0)
        else:
            mean, var = mm, mv

        inv_std = jax.lax.rsqrt(var + jnp.float32(eps))
        scale = g * inv_std                             # (1, C)
        bias = b - mean * scale                         # (1, C)
        y = _affine_cols(x, scale, bias)

        new_mm, new_mv = moving_mean, moving_var
        if training:
            new_mm = (momentum * mm + (1.0 - momentum) * mean).reshape(
                moving_mean.shape).astype(moving_mean.dtype)
            new_mv = (momentum * mv + (1.0 - momentum) * var).reshape(
                moving_var.shape).astype(moving_var.dtype)
        return y, new_mm, new_mv

    # ---- 4-D NCHW case ----
    N, C, H, W = x.shape
    HW, NC = H * W, N * C
    x2 = x.reshape(NC, HW)          # free view of NCHW, no transpose
    g = gamma.reshape(C).astype(jnp.float32)
    b = beta.reshape(C).astype(jnp.float32)
    mm = moving_mean.reshape(C).astype(jnp.float32)
    mv = moving_var.reshape(C).astype(jnp.float32)

    if training:
        row_s, row_sq = _row_stats(x2)                  # (NC, 1) partials
        ch_s = row_s.reshape(N, C).sum(axis=0)          # tiny per-channel fold
        ch_sq = row_sq.reshape(N, C).sum(axis=0)
        count = jnp.float32(N * HW)
        mean = ch_s / count                             # (C,)
        var = jnp.maximum(ch_sq / count - mean * mean, 0.0)
    else:
        mean, var = mm, mv

    inv_std = jax.lax.rsqrt(var + jnp.float32(eps))
    scale_c = g * inv_std                               # (C,)
    bias_c = b - mean * scale_c                         # (C,)
    # rows of x2 are ordered n*C + c -> coefficient of row r is channel r % C
    scale_rows = jnp.broadcast_to(scale_c, (N, C)).reshape(NC, 1)
    bias_rows = jnp.broadcast_to(bias_c, (N, C)).reshape(NC, 1)
    y = _affine_rows(x2, scale_rows, bias_rows).reshape(N, C, H, W)

    new_mm, new_mv = moving_mean, moving_var
    if training:
        new_mm = (momentum * mm + (1.0 - momentum) * mean).reshape(
            moving_mean.shape).astype(moving_mean.dtype)
        new_mv = (momentum * mv + (1.0 - momentum) * var).reshape(
            moving_var.shape).astype(moving_var.dtype)
    return y, new_mm, new_mv


class BatchNorm:
    """JAX mirror of the PyTorch BatchNorm module."""

    def __init__(self, num_features, num_dims):
        shape = (1, num_features) if num_dims == 2 else (1, num_features, 1, 1)
        self.gamma = jnp.ones(shape, dtype=jnp.float32)
        self.beta = jnp.zeros(shape, dtype=jnp.float32)
        self.moving_mean = jnp.zeros(shape, dtype=jnp.float32)
        self.moving_var = jnp.ones(shape, dtype=jnp.float32)

    def __call__(self, x, training=True):
        y, mm, mv = batch_norm_forward(
            x, self.gamma, self.beta, self.moving_mean, self.moving_var,
            eps=1e-5, momentum=0.9, training=training)
        if training:
            self.moving_mean, self.moving_var = mm, mv
        return y


def _reference(x, gamma, beta, moving_mean, moving_var, eps=1e-5, momentum=0.9):
    """Pure-JAX reference of the PyTorch batch_norm training branch."""
    if x.ndim == 2:
        mean = x.mean(axis=0)
        var = ((x - mean) ** 2).mean(axis=0)
    else:
        mean = x.mean(axis=(0, 2, 3), keepdims=True)
        var = ((x - mean) ** 2).mean(axis=(0, 2, 3), keepdims=True)
    x_hat = (x - mean) / jnp.sqrt(var + eps)
    y = gamma * x_hat + beta
    new_mm = momentum * moving_mean + (1.0 - momentum) * mean
    new_mv = momentum * moving_var + (1.0 - momentum) * var
    return y, new_mm, new_mv


if __name__ == "__main__":
    key = jax.random.PRNGKey(0)

    # --- 4-D (conv) case: NCHW ---
    N, C, H, W = 2, 4, 16, 16
    x4 = jax.random.normal(key, (N, C, H, W), dtype=jnp.float32)
    bn4 = BatchNorm(num_features=C, num_dims=4)
    y4 = bn4(x4)
    jax.block_until_ready(y4)

    ref_y4, ref_mm4, ref_mv4 = _reference(
        x4, jnp.ones((1, C, 1, 1)), jnp.zeros((1, C, 1, 1)),
        jnp.zeros((1, C, 1, 1)), jnp.ones((1, C, 1, 1)))
    assert jnp.allclose(y4, ref_y4, atol=1e-4, rtol=1e-4)
    assert jnp.allclose(bn4.moving_mean, ref_mm4, atol=1e-5, rtol=1e-5)
    assert jnp.allclose(bn4.moving_var, ref_mv4, atol=1e-5, rtol=1e-5)

    # eval-mode (inference branch) check, 4-D
    y4_eval, _, _ = batch_norm_forward(
        x4, jnp.ones((1, C, 1, 1)), jnp.zeros((1, C, 1, 1)),
        ref_mm4, ref_mv4, training=False)
    jax.block_until_ready(y4_eval)
    ref_eval = (x4 - ref_mm4) / jnp.sqrt(ref_mv4 + 1e-5)
    assert jnp.allclose(y4_eval, ref_eval, atol=1e-4, rtol=1e-4)

    # --- 2-D (fully-connected) case ---
    B, F = 8, 32
    x2 = jax.random.normal(jax.random.PRNGKey(1), (B, F), dtype=jnp.float32)
    bn2 = BatchNorm(num_features=F, num_dims=2)
    y2 = bn2(x2)
    jax.block_until_ready(y2)

    ref_y2, ref_mm2, ref_mv2 = _reference(
        x2, jnp.ones((1, F)), jnp.zeros((1, F)),
        jnp.zeros((1, F)), jnp.ones((1, F)))
    assert jnp.allclose(y2, ref_y2, atol=1e-4, rtol=1e-4)
    assert jnp.allclose(bn2.moving_mean, ref_mm2, atol=1e-5, rtol=1e-5)
    assert jnp.allclose(bn2.moving_var, ref_mv2, atol=1e-5, rtol=1e-5)

    print("KERNEL_OK")
</pallas_src>

<mosaic_0001>
module attributes {stable_mosaic.version = 11 : i64} {
  func.func @_row_stats_kernel(%arg0: i32, %arg1: memref<8x256xf32, #tpu.memory_space<vmem>>, %arg2: memref<8x1xf32, #tpu.memory_space<vmem>>, %arg3: memref<8x1xf32, #tpu.memory_space<vmem>>) attributes {dimension_semantics = [#tpu.dimension_semantics<parallel>], iteration_bounds = array<i64: 1>, scalar_prefetch = 0 : i64, scratch_operands = 0 : i64, tpu.core_type = #tpu.core_type<tc>, window_params = [{transform_indices = @transform_0, window_bounds = array<i64: 8, 256>}, {transform_indices = @transform_1, window_bounds = array<i64: 8, 1>}, {transform_indices = @transform_2, window_bounds = array<i64: 8, 1>}]} {
    %c0 = arith.constant 0 : index
    %c0_0 = arith.constant 0 : index
    %0 = vector.load %arg1[%c0, %c0_0] : memref<8x256xf32, #tpu.memory_space<vmem>>, vector<8x256xf32>
    %cst = arith.constant dense<0.000000e+00> : vector<8xf32>
    %1 = vector.multi_reduction <add>, %0, %cst [1] : vector<8x256xf32> to vector<8xf32>
    %2 = vector.shape_cast %1 : vector<8xf32> to vector<8x1xf32>
    %c0_1 = arith.constant 0 : index
    %c0_2 = arith.constant 0 : index
    %3 = vector.load %arg2[%c0_1, %c0_2] : memref<8x1xf32, #tpu.memory_space<vmem>>, vector<8x1xf32>
    tpu.vector_store %arg2[%c0_1, %c0_2], %2 {strides = array<i32>} : memref<8x1xf32, #tpu.memory_space<vmem>>, vector<8x1xf32>,
    %4 = arith.mulf %0, %0 : vector<8x256xf32>
    %cst_3 = arith.constant dense<0.000000e+00> : vector<8xf32>
    %5 = vector.multi_reduction <add>, %4, %cst_3 [1] : vector<8x256xf32> to vector<8xf32>
    %6 = vector.shape_cast %5 : vector<8xf32> to vector<8x1xf32>
    %c0_4 = arith.constant 0 : index
    %c0_5 = arith.constant 0 : index
    %7 = vector.load %arg3[%c0_4, %c0_5] : memref<8x1xf32, #tpu.memory_space<vmem>>, vector<8x1xf32>
    tpu.vector_store %arg3[%c0_4, %c0_5], %6 {strides = array<i32>} : memref<8x1xf32, #tpu.memory_space<vmem>>, vector<8x1xf32>,
    return
  }
  func.func @transform_0(%arg0: i32) -> (i32, i32) {
    %c0_i32 = arith.constant 0 : i32
    %c0_i32_0 = arith.constant 0 : i32
    return %arg0, %c0_i32 : i32, i32
  }
  func.func @transform_1(%arg0: i32) -> (i32, i32) {
    %c0_i32 = arith.constant 0 : i32
    %c0_i32_0 = arith.constant 0 : i32
    return %arg0, %c0_i32 : i32, i32
  }
  func.func @transform_2(%arg0: i32) -> (i32, i32) {
    %c0_i32 = arith.constant 0 : i32
    %c0_i32_0 = arith.constant 0 : i32
    return %arg0, %c0_i32 : i32, i32
  }
}

</mosaic_0001>

<llo_original>
// kernel: tpu_custom_call.1
$region0: #{tpu_custom_call.1}
  #allocation0 [shape = 'u32[]', space=smem, size = 0x4, offset = 0x4, fixed_abs, tag = 'smem constant byte address 0x4 - core index']
  #allocation1 [shape = 'u32[144,128]{1,0:T(1,128)}', space=vmem, size = 0x12000, scoped, tag = 'internal scratch']
  %s0 = inlined_call_operand.hbm [shape: f32[8,256], index: 0, kind: input, shape index: {}]
  %s1 = inlined_call_operand.vmem [shape: f32[8,1], index: 1, kind: output, shape index: {0}]
  %s2 = inlined_call_operand.vmem [shape: f32[8,1], index: 2, kind: output, shape index: {1}]
  %3 = xla_tuple %s1, %s2
  %s4 = sld [smem:[#allocation0]]
  $region26: #{tpu_custom_call.1} parent=0
    _
  %s6 = ssub.s32 1, %s4
  %s7 = scalar_select 0, %s6, %s4
  $region1: #{tpu_custom_call.1} parent=0
    #allocation2 [shape = 'u8[8192]{0}', space=vmem, size = 0x2000, scoped, tag = 'input window, operand 0, single buffered']
    #allocation3 [shape = 's32[1]{0}', space=sflag, size = 0x4, scoped, tag = 'scoped memory for tpu_custom_call.1']
    %8 = vsyncpa [#allocation3], 0
    // Predicated region
    $region2: #{tpu_custom_call.1} parent=1 // pred_check
      _
    $region3: #{tpu_custom_call.1} parent=1 // pred_check_branch
      %10 = sbr.rel (0) target = $region5
    $region4: #{tpu_custom_call.1} parent=1 // pred_region
      %s12 = ssub.s32 256, 256
      %13 = vsyncadd [#allocation3], %s12
      %s15 = sshll.u32 [#allocation2], 4
      %s16 = int_to_ptr.vmem [resolvable:$true] %s15
      %18 = dma.hbm_to_vmem [thread:$0]  %s0, 256, %s16, [#allocation3]
    $region5: #{tpu_custom_call.1} parent=1 // pred_fallthru
      _
    // Predicated region
    $region6: #{tpu_custom_call.1} parent=1 // pred_check
      _
    $region7: #{tpu_custom_call.1} parent=1 // pred_check_branch
      %20 = sbr.rel (0) target = $region9
    $region8: #{tpu_custom_call.1} parent=1 // pred_region
      %21 = dma.done [#allocation3], 256
    $region9: #{tpu_custom_call.1} parent=1 // pred_fallthru
      _
    %v22 = vld [vmem:[#allocation2] sm:$0xff]
    %v23 = vld [vmem:[#allocation2 + $0x8] sm:$0xff]
    %v24 = vadd.f32 %v22, %v23
    %25 = vadd.xlane.f32.xlu0 %v24
    %v26 = vpop.xlane.xlu0 %25
    %vm27 = vcmask 7168
    %28 = vst.msk [vmem:[%s1] sm:$0xff] %vm27, %v26
    %v29 = vmul.f32 %v22, %v22
    %v30 = vmul.f32 %v23, %v23
    %v31 = vadd.f32 %v29, %v30
    %32 = vadd.xlane.f32.xlu0 %v31
    %v33 = vpop.xlane.xlu0 %32
    %34 = vst.msk [vmem:[%s2] sm:$0xff] %vm27, %v33
    // Predicated region
    $region10: #{tpu_custom_call.1} parent=1 // pred_check
      _
    $region11: #{tpu_custom_call.1} parent=1 // pred_check_branch
      %36 = sbr.rel (0) target = $region13
    $region12: #{tpu_custom_call.1} parent=1 // pred_region
      _
    $region13: #{tpu_custom_call.1} parent=1 // pred_fallthru
      _
    // Predicated region
    $region14: #{tpu_custom_call.1} parent=1 // pred_check
      _
    $region15: #{tpu_custom_call.1} parent=1 // pred_check_branch
      %38 = sbr.rel (0) target = $region17
    $region16: #{tpu_custom_call.1} parent=1 // pred_region
      _
    $region17: #{tpu_custom_call.1} parent=1 // pred_fallthru
      _
    // Predicated region
    $region18: #{tpu_custom_call.1} parent=1 // pred_check
      _
    $region19: #{tpu_custom_call.1} parent=1 // pred_check_branch
      %40 = sbr.rel (0) target = $region21
    $region20: #{tpu_custom_call.1} parent=1 // pred_region
      _
    $region21: #{tpu_custom_call.1} parent=1 // pred_fallthru
      _
    // Predicated region
    $region22: #{tpu_custom_call.1} parent=1 // pred_check
      _
    $region23: #{tpu_custom_call.1} parent=1 // pred_check_branch
      %42 = sbr.rel (0) target = $region25
    $region24: #{tpu_custom_call.1} parent=1 // pred_region
      _
    $region25: #{tpu_custom_call.1} parent=1 // pred_fallthru
      _
    %43 = vsyncpa [#allocation3], 1

</llo_original>
